<compile_context>
chip_gen: v7x
topology: tpu7x:2x2x1
jax: 0.10.0
libtpu: 0.0.40
codegen_flags: <defaults>
</compile_context>

<pallas_src>
import functools

import jax
import jax.numpy as jnp
from jax.experimental import pallas as pl
from jax.experimental.pallas import tpu as pltpu


def _conv_block1_kernel(x_ref, w1_ref, b1_ref, w2_ref, b2_ref, o_ref, *,
                        bn, H, neg_slope):
    """Fused conv_block1 forward for one batch block (bn images).

    x_ref : (bn*H, W*Cin)        lane-dense input rows
    w1_ref: (3, W*Cin, W*C1)     conv1 banded weights (kw taps + W-reflection)
    b1_ref: (1, W*C1)            conv1 bias, tiled per pixel
    w2_ref: (3, W*C1, W*C2)      conv2 banded weights
    b2_ref: (1, W*C2)            conv2 bias, tiled per pixel
    o_ref : (bn*H, W*C2)         lane-dense output rows
    """
    m = bn * H

    def conv3x3(x2, w_ref, b_ref):
        # x2: (m, W*C) f32.  Height reflection + kh taps via sublane rolls;
        # kw taps + width reflection are pre-folded into the banded weights.
        wc = x2.shape[-1]
        # Row index within each image (block always starts at an image start).
        rid = jax.lax.broadcasted_iota(jnp.int32, (bn, H, wc), 1).reshape(m, wc)
        up = pltpu.roll(x2, shift=1, axis=0)        # row h-1 at row h
        dn = pltpu.roll(x2, shift=m - 1, axis=0)    # row h+1 at row h (== -1)
        # ReflectionPad2d(1) along H: row -1 -> row 1, row H -> row H-2.
        # The roll wrap-around only happens on exactly the masked rows, so
        # folding the batch into the row axis stays per-image correct.
        tap0 = jnp.where(rid == 0, dn, up)
        tap2 = jnp.where(rid == H - 1, up, dn)
        y = (jnp.dot(tap0, w_ref[0], preferred_element_type=jnp.float32)
             + jnp.dot(x2, w_ref[1], preferred_element_type=jnp.float32)
             + jnp.dot(tap2, w_ref[2], preferred_element_type=jnp.float32))
        return y + b_ref[...]                       # (1, W*Cout) broadcast

    x = x_ref[...].astype(jnp.float32)              # (m, W*Cin)
    c1 = conv3x3(x, w1_ref, b1_ref)                 # conv1
    # F.interpolate(scale_factor=1, mode='bicubic', align_corners=True) maps
    # every output pixel exactly onto an input pixel -> identity (folded out).
    out = conv3x3(c1, w2_ref, b2_ref)               # conv2
    out = jnp.where(out >= 0, out, neg_slope * out)  # LeakyReLU(0.01)
    o_ref[...] = out.astype(o_ref.dtype)            # lane-dense, unmasked vst


def _banded_weight(w_hwio, width):
    """Fold the kw taps and the width-direction ReflectionPad2d(1) of a 3x3
    conv into per-kh banded matmul weights for lane-dense (W*C) rows.

    w_hwio : (3, 3, Cin, Cout)
    returns: (3, width*Cin, width*Cout) with
      band[kh, p*Cin + c, q*Cout + o] = sum_{kw : reflect(q+kw-1) == p} w[kh,kw,c,o]
    """
    kh, kw, cin, cout = w_hwio.shape
    band = jnp.zeros((kh, width * cin, width * cout), jnp.float32)
    for q in range(width):                 # output pixel column
        for t in range(kw):                # kw tap
            p = q + t - 1
            if p < 0:
                p = -p                     # reflect: -1 -> 1
            elif p > width - 1:
                p = 2 * (width - 1) - p    # reflect: W -> W-2
            band = band.at[:, p * cin:(p + 1) * cin,
                           q * cout:(q + 1) * cout].add(w_hwio[:, t])
    return band


@functools.partial(jax.jit, static_argnames=("batch_blocks",))
def conv_block1_forward(x_nchw, params, *, batch_blocks=1):
    """Full conv_block1 forward. x_nchw: (N, C, H, W) float32.

    batch_blocks=1 folds the whole batch into one grid step (best on the
    single-TC v5e/v6e); on v7x with larger N use batch_blocks=2 so each
    TensorCore takes half the batch.
    """
    w1, b1, w2, b2 = params                          # HWIO weights
    N, Cin, H, W = x_nchw.shape
    C1 = w1.shape[-1]
    C2 = w2.shape[-1]
    assert H >= 2 and W >= 2, "ReflectionPad2d(1) requires H, W >= 2"
    assert w2.shape[2] == C1, "conv2 must consume conv1's output channels"
    assert N % batch_blocks == 0
    bn = N // batch_blocks

    # NCHW -> NHWC -> lane-dense rows (N*H, W*Cin).
    x = jnp.transpose(x_nchw, (0, 2, 3, 1)).reshape(N * H, W * Cin)
    # Fold kw taps + width reflection into banded weights; tile bias per pixel.
    w1b = _banded_weight(w1, W)                      # (3, W*Cin, W*C1)
    w2b = _banded_weight(w2, W)                      # (3, W*C1,  W*C2)
    b1t = jnp.tile(b1.astype(jnp.float32), W)[None, :]   # (1, W*C1)
    b2t = jnp.tile(b2.astype(jnp.float32), W)[None, :]   # (1, W*C2)

    kernel = functools.partial(_conv_block1_kernel, bn=bn, H=H, neg_slope=0.01)
    out2d = pl.pallas_call(
        kernel,
        out_shape=jax.ShapeDtypeStruct((N * H, W * C2), x.dtype),
        grid=(batch_blocks,),
        in_specs=[
            pl.BlockSpec((bn * H, W * Cin), lambda i: (i, 0)),
            # Constant index_maps: weights/bias DMA'd once, VMEM-resident.
            pl.BlockSpec((3, W * Cin, W * C1), lambda i: (0, 0, 0)),
            pl.BlockSpec((1, W * C1), lambda i: (0, 0)),
            pl.BlockSpec((3, W * C1, W * C2), lambda i: (0, 0, 0)),
            pl.BlockSpec((1, W * C2), lambda i: (0, 0)),
        ],
        out_specs=pl.BlockSpec((bn * H, W * C2), lambda i: (i, 0)),
        compiler_params=pltpu.CompilerParams(
            dimension_semantics=("parallel",)),
    )(x, w1b, b1t, w2b, b2t)

    out = out2d.reshape(N, H, W, C2)                 # free reshape
    return jnp.transpose(out, (0, 3, 1, 2))          # NHWC -> NCHW


def _reference(x_nchw, params):
    """Pure-JAX reference (lax.conv) for a correctness check."""
    w1, b1, w2, b2 = params
    x = jnp.transpose(x_nchw, (0, 2, 3, 1))

    def conv(x, w, b):
        xp = jnp.pad(x, ((0, 0), (1, 1), (1, 1), (0, 0)), mode="reflect")
        y = jax.lax.conv_general_dilated(
            xp, w, window_strides=(1, 1), padding="VALID",
            dimension_numbers=("NHWC", "HWIO", "NHWC"))
        return y + b

    c1 = conv(x, w1, b1)
    o = conv(c1, w2, b2)
    o = jnp.where(o >= 0, o, 0.01 * o)
    return jnp.transpose(o, (0, 3, 1, 2))


def init_params(key, cin, cout, k=3):
    """Deterministic PyTorch-style (kaiming-uniform-ish) init, HWIO layout."""
    k1, k2, k3, k4 = jax.random.split(key, 4)
    bound = 1.0 / jnp.sqrt(cin * k * k)
    w1 = jax.random.uniform(k1, (k, k, cin, cout), jnp.float32, -bound, bound)
    b1 = jax.random.uniform(k2, (cout,), jnp.float32, -bound, bound)
    w2 = jax.random.uniform(k3, (k, k, cout, cout), jnp.float32, -bound, bound)
    b2 = jax.random.uniform(k4, (cout,), jnp.float32, -bound, bound)
    return w1, b1, w2, b2


if __name__ == "__main__":
    key = jax.random.PRNGKey(0)
    kx, kp = jax.random.split(key)

    # input_size must equal output_size (32) for the PyTorch module to run.
    N, C, H, W = 2, 32, 8, 8
    x = jax.random.normal(kx, (N, C, H, W), jnp.float32)
    params = init_params(kp, cin=C, cout=C)

    out = jax.block_until_ready(conv_block1_forward(x, params))
    ref = jax.block_until_ready(_reference(x, params))

    assert out.shape == (N, C, H, W), out.shape
    assert jnp.allclose(out, ref, atol=1e-4, rtol=1e-4), \
        float(jnp.max(jnp.abs(out - ref)))
    print("KERNEL_OK")
</pallas_src>

<mosaic_0001>
module attributes {stable_mosaic.version = 11 : i64} {
  func.func @_conv_block1_kernel(%arg0: i32, %arg1: memref<16x256xf32, #tpu.memory_space<vmem>>, %arg2: memref<3x256x256xf32, #tpu.memory_space<vmem>>, %arg3: memref<1x256xf32, #tpu.memory_space<vmem>>, %arg4: memref<3x256x256xf32, #tpu.memory_space<vmem>>, %arg5: memref<1x256xf32, #tpu.memory_space<vmem>>, %arg6: memref<16x256xf32, #tpu.memory_space<vmem>>) attributes {dimension_semantics = [#tpu.dimension_semantics<parallel>], iteration_bounds = array<i64: 1>, scalar_prefetch = 0 : i64, scratch_operands = 0 : i64, tpu.core_type = #tpu.core_type<tc>, window_params = [{transform_indices = @transform_0, window_bounds = array<i64: 16, 256>}, {pipeline_mode = #tpu.pipeline_mode<synchronous>, transform_indices = @transform_1, window_bounds = array<i64: 3, 256, 256>}, {pipeline_mode = #tpu.pipeline_mode<synchronous>, transform_indices = @transform_2, window_bounds = array<i64: 1, 256>}, {pipeline_mode = #tpu.pipeline_mode<synchronous>, transform_indices = @transform_3, window_bounds = array<i64: 3, 256, 256>}, {pipeline_mode = #tpu.pipeline_mode<synchronous>, transform_indices = @transform_4, window_bounds = array<i64: 1, 256>}, {transform_indices = @transform_5, window_bounds = array<i64: 16, 256>}]} {
    %c0 = arith.constant 0 : index
    %c0_0 = arith.constant 0 : index
    %0 = vector.load %arg1[%c0, %c0_0] : memref<16x256xf32, #tpu.memory_space<vmem>>, vector<16x256xf32>
    %1 = tpu.iota {dimensions = array<i32: 1>} : vector<2x8x256xi32>
    %2 = vector.shape_cast %1 : vector<2x8x256xi32> to vector<16x256xi32>
    %c1_i32 = arith.constant 1 : i32
    %3 = tpu.dynamic_rotate %0 by %c1_i32 dim 0 : vector<16x256xf32>, i32 -> vector<16x256xf32>
    %c15_i32 = arith.constant 15 : i32
    %4 = tpu.dynamic_rotate %0 by %c15_i32 dim 0 : vector<16x256xf32>, i32 -> vector<16x256xf32>
    %c0_i32 = arith.constant 0 : i32
    %5 = vector.broadcast %c0_i32 : i32 to vector<16x256xi32>
    %6 = arith.cmpi eq, %2, %5 : vector<16x256xi32>
    %7 = arith.select %6, %4, %3 : vector<16x256xi1>, vector<16x256xf32>
    %c7_i32 = arith.constant 7 : i32
    %8 = vector.broadcast %c7_i32 : i32 to vector<16x256xi32>
    %9 = arith.cmpi eq, %2, %8 : vector<16x256xi32>
    %10 = arith.select %9, %3, %4 : vector<16x256xi1>, vector<16x256xf32>
    %c0_1 = arith.constant 0 : index
    %c0_2 = arith.constant 0 : index
    %c0_3 = arith.constant 0 : index
    %11 = vector.load %arg2[%c0_1, %c0_2, %c0_3] : memref<3x256x256xf32, #tpu.memory_space<vmem>>, vector<1x256x256xf32>
    %12 = vector.shape_cast %11 : vector<1x256x256xf32> to vector<256x256xf32>
    %cst = arith.constant dense<0.000000e+00> : vector<16x256xf32>
    %13 = tpu.matmul %7, %12, %cst {dimension_numbers = #tpu.dot_dimension_numbers<[1], [0], [0], [1], [0, 0, 1, 1], [], []>} : vector<16x256xf32>, vector<256x256xf32>, vector<16x256xf32> -> vector<16x256xf32>
    %c1 = arith.constant 1 : index
    %c0_4 = arith.constant 0 : index
    %c0_5 = arith.constant 0 : index
    %14 = vector.load %arg2[%c1, %c0_4, %c0_5] : memref<3x256x256xf32, #tpu.memory_space<vmem>>, vector<1x256x256xf32>
    %15 = vector.shape_cast %14 : vector<1x256x256xf32> to vector<256x256xf32>
    %cst_6 = arith.constant dense<0.000000e+00> : vector<16x256xf32>
    %16 = tpu.matmul %0, %15, %cst_6 {dimension_numbers = #tpu.dot_dimension_numbers<[1], [0], [0], [1], [0, 0, 1, 1], [], []>} : vector<16x256xf32>, vector<256x256xf32>, vector<16x256xf32> -> vector<16x256xf32>
    %17 = arith.addf %13, %16 : vector<16x256xf32>
    %c2 = arith.constant 2 : index
    %c0_7 = arith.constant 0 : index
    %c0_8 = arith.constant 0 : index
    %18 = vector.load %arg2[%c2, %c0_7, %c0_8] : memref<3x256x256xf32, #tpu.memory_space<vmem>>, vector<1x256x256xf32>
    %19 = vector.shape_cast %18 : vector<1x256x256xf32> to vector<256x256xf32>
    %cst_9 = arith.constant dense<0.000000e+00> : vector<16x256xf32>
    %20 = tpu.matmul %10, %19, %cst_9 {dimension_numbers = #tpu.dot_dimension_numbers<[1], [0], [0], [1], [0, 0, 1, 1], [], []>} : vector<16x256xf32>, vector<256x256xf32>, vector<16x256xf32> -> vector<16x256xf32>
    %21 = arith.addf %17, %20 : vector<16x256xf32>
    %c0_10 = arith.constant 0 : index
    %c0_11 = arith.constant 0 : index
    %22 = vector.load %arg3[%c0_10, %c0_11] : memref<1x256xf32, #tpu.memory_space<vmem>>, vector<1x256xf32>
    %23 = vector.broadcast %22 : vector<1x256xf32> to vector<16x256xf32>
    %24 = arith.addf %21, %23 : vector<16x256xf32>
    %25 = tpu.iota {dimensions = array<i32: 1>} : vector<2x8x256xi32>
    %26 = vector.shape_cast %25 : vector<2x8x256xi32> to vector<16x256xi32>
    %c1_i32_12 = arith.constant 1 : i32
    %27 = tpu.dynamic_rotate %24 by %c1_i32_12 dim 0 : vector<16x256xf32>, i32 -> vector<16x256xf32>
    %c15_i32_13 = arith.constant 15 : i32
    %28 = tpu.dynamic_rotate %24 by %c15_i32_13 dim 0 : vector<16x256xf32>, i32 -> vector<16x256xf32>
    %c0_i32_14 = arith.constant 0 : i32
    %29 = vector.broadcast %c0_i32_14 : i32 to vector<16x256xi32>
    %30 = arith.cmpi eq, %26, %29 : vector<16x256xi32>
    %31 = arith.select %30, %28, %27 : vector<16x256xi1>, vector<16x256xf32>
    %c7_i32_15 = arith.constant 7 : i32
    %32 = vector.broadcast %c7_i32_15 : i32 to vector<16x256xi32>
    %33 = arith.cmpi eq, %26, %32 : vector<16x256xi32>
    %34 = arith.select %33, %27, %28 : vector<16x256xi1>, vector<16x256xf32>
    %c0_16 = arith.constant 0 : index
    %c0_17 = arith.constant 0 : index
    %c0_18 = arith.constant 0 : index
    %35 = vector.load %arg4[%c0_16, %c0_17, %c0_18] : memref<3x256x256xf32, #tpu.memory_space<vmem>>, vector<1x256x256xf32>
    %36 = vector.shape_cast %35 : vector<1x256x256xf32> to vector<256x256xf32>
    %cst_19 = arith.constant dense<0.000000e+00> : vector<16x256xf32>
    %37 = tpu.matmul %31, %36, %cst_19 {dimension_numbers = #tpu.dot_dimension_numbers<[1], [0], [0], [1], [0, 0, 1, 1], [], []>} : vector<16x256xf32>, vector<256x256xf32>, vector<16x256xf32> -> vector<16x256xf32>
    %c1_20 = arith.constant 1 : index
    %c0_21 = arith.constant 0 : index
    %c0_22 = arith.constant 0 : index
    %38 = vector.load %arg4[%c1_20, %c0_21, %c0_22] : memref<3x256x256xf32, #tpu.memory_space<vmem>>, vector<1x256x256xf32>
    %39 = vector.shape_cast %38 : vector<1x256x256xf32> to vector<256x256xf32>
    %cst_23 = arith.constant dense<0.000000e+00> : vector<16x256xf32>
    %40 = tpu.matmul %24, %39, %cst_23 {dimension_numbers = #tpu.dot_dimension_numbers<[1], [0], [0], [1], [0, 0, 1, 1], [], []>} : vector<16x256xf32>, vector<256x256xf32>, vector<16x256xf32> -> vector<16x256xf32>
    %41 = arith.addf %37, %40 : vector<16x256xf32>
    %c2_24 = arith.constant 2 : index
    %c0_25 = arith.constant 0 : index
    %c0_26 = arith.constant 0 : index
    %42 = vector.load %arg4[%c2_24, %c0_25, %c0_26] : memref<3x256x256xf32, #tpu.memory_space<vmem>>, vector<1x256x256xf32>
    %43 = vector.shape_cast %42 : vector<1x256x256xf32> to vector<256x256xf32>
    %cst_27 = arith.constant dense<0.000000e+00> : vector<16x256xf32>
    %44 = tpu.matmul %34, %43, %cst_27 {dimension_numbers = #tpu.dot_dimension_numbers<[1], [0], [0], [1], [0, 0, 1, 1], [], []>} : vector<16x256xf32>, vector<256x256xf32>, vector<16x256xf32> -> vector<16x256xf32>
    %45 = arith.addf %41, %44 : vector<16x256xf32>
    %c0_28 = arith.constant 0 : index
    %c0_29 = arith.constant 0 : index
    %46 = vector.load %arg5[%c0_28, %c0_29] : memref<1x256xf32, #tpu.memory_space<vmem>>, vector<1x256xf32>
    %47 = vector.broadcast %46 : vector<1x256xf32> to vector<16x256xf32>
    %48 = arith.addf %45, %47 : vector<16x256xf32>
    %cst_30 = arith.constant 0.000000e+00 : f32
    %49 = vector.broadcast %cst_30 : f32 to vector<16x256xf32>
    %50 = arith.cmpf oge, %48, %49 : vector<16x256xf32>
    %cst_31 = arith.constant 0.00999999977 : f32
    %51 = vector.broadcast %cst_31 : f32 to vector<16x256xf32>
    %52 = arith.mulf %51, %48 : vector<16x256xf32>
    %53 = arith.select %50, %48, %52 : vector<16x256xi1>, vector<16x256xf32>
    %c0_32 = arith.constant 0 : index
    %c0_33 = arith.constant 0 : index
    %54 = vector.load %arg6[%c0_32, %c0_33] : memref<16x256xf32, #tpu.memory_space<vmem>>, vector<16x256xf32>
    tpu.vector_store %arg6[%c0_32, %c0_33], %53 {strides = array<i32>} : memref<16x256xf32, #tpu.memory_space<vmem>>, vector<16x256xf32>,
    return
  }
  func.func @transform_0(%arg0: i32) -> (i32, i32) {
    %c0_i32 = arith.constant 0 : i32
    %c0_i32_0 = arith.constant 0 : i32
    return %arg0, %c0_i32 : i32, i32
  }
  func.func @transform_1(%arg0: i32) -> (i32, i32, i32) {
    %c0_i32 = arith.constant 0 : i32
    %c0_i32_0 = arith.constant 0 : i32
    %c0_i32_1 = arith.constant 0 : i32
    %c0_i32_2 = arith.constant 0 : i32
    return %c0_i32, %c0_i32_0, %c0_i32_1 : i32, i32, i32
  }
  func.func @transform_2(%arg0: i32) -> (i32, i32) {
    %c0_i32 = arith.constant 0 : i32
    %c0_i32_0 = arith.constant 0 : i32
    %c0_i32_1 = arith.constant 0 : i32
    return %c0_i32, %c0_i32_0 : i32, i32
  }
  func.func @transform_3(%arg0: i32) -> (i32, i32, i32) {
    %c0_i32 = arith.constant 0 : i32
    %c0_i32_0 = arith.constant 0 : i32
    %c0_i32_1 = arith.constant 0 : i32
    %c0_i32_2 = arith.constant 0 : i32
    return %c0_i32, %c0_i32_0, %c0_i32_1 : i32, i32, i32
  }
  func.func @transform_4(%arg0: i32) -> (i32, i32) {
    %c0_i32 = arith.constant 0 : i32
    %c0_i32_0 = arith.constant 0 : i32
    %c0_i32_1 = arith.constant 0 : i32
    return %c0_i32, %c0_i32_0 : i32, i32
  }
  func.func @transform_5(%arg0: i32) -> (i32, i32) {
    %c0_i32 = arith.constant 0 : i32
    %c0_i32_0 = arith.constant 0 : i32
    return %arg0, %c0_i32 : i32, i32
  }
}

</mosaic_0001>

<llo_original>
// kernel: tile.13
$region0: #{tile.13}
  #allocation0 [shape = 's32[1]{0}', space=sflag, size = 0x4, scoped, tag = 'scoped memory for tile.13']
  %s0 = inlined_call_operand.vmem [shape: f32[32], index: 0, kind: input, shape index: {}]
  %s1 = inlined_call_operand.vmem [shape: f32[8,32], index: 1, kind: output, shape index: {}]
  // Predicated region
  $region2: #{tile.13} parent=0 // pred_check
    _
  $region3: #{tile.13} parent=0 // pred_check_branch
    %3 = sbr.rel (0) target = $region5
  $region4: #{tile.13} parent=0 // pred_region
    _
  $region5: #{tile.13} parent=0 // pred_fallthru
    _
  %v4 = vld [vmem:[%s0] ss:$0 sm:$0xff]
  %5 = vst [vmem:[%s1] sm:$0xff] %v4

// kernel: tile.14
$region0: #{tile.14}
  %s0 = inlined_call_operand.vmem [shape: f32[8,32], index: 0, kind: input, shape index: {}]
  %s1 = inlined_call_operand.vmem [shape: f32[1,256], index: 1, kind: output, shape index: {}]
  $region1: #{tile.14} parent=0
    #allocation0 [shape = 'u8[8192]{0}', space=vmem, size = 0x2000, scoped, tag = 'scoped mem for output reshape']
    %s2 = smov 3
    %v3 = vld [vmem:[%s0] ss:$4 sm:%s2]
    %vm4 = vcmask 261120
    %5 = vst.msk [vmem:[#allocation0] ss:$8 sm:$0x3] %vm4, %v3
    %s6 = scalar_lea.vmem %s0, 3
    %s7 = smov 3
    %v8 = vld [vmem:[%s6] ss:$4 sm:%s7]
    %9 = vrot.lane.b32.xlu0 %v8, 96
    %v10 = vpop.permute.xlu0 %9
    %vm11 = vcmask 1048320
    %12 = vst.msk [vmem:[#allocation0] ss:$8 sm:$0x3] %vm11, %v10
    %s13 = scalar_lea.vmem %s0, 2
    %s14 = smov 3
    %v15 = vld [vmem:[%s13] ss:$4 sm:%s14]
    %16 = vrot.lane.b32.xlu0 %v15, 64
    %v17 = vpop.permute.xlu0 %16
    %vm18 = vcmask 785920
    %19 = vst.msk [vmem:[#allocation0] ss:$8 sm:$0x3] %vm18, %v17
    %s20 = scalar_lea.vmem %s0, 1
    %s21 = smov 3
    %v22 = vld [vmem:[%s20] ss:$4 sm:%s21]
    %23 = vrot.lane.b32.xlu0 %v22, 32
    %v24 = vpop.permute.xlu0 %23
    %vm25 = vcmask 523520
    %26 = vst.msk [vmem:[#allocation0] ss:$8 sm:$0x3] %vm25, %v24
    %s28 = sshllo.u32 0, 1
    %v30 = vld [vmem:[#allocation0] sm:%s28]
    %s31 = sshllo.u32 0, 1
    %32 = vst [vmem:[%s1] sm:%s31] %v30
    %s33 = scalar_lea.vmem [#allocation0], 8
    %v34 = vld [vmem:[%s33] sm:%s28]
    %s35 = sshllo.u32 0, 1
    %s36 = scalar_lea.vmem %s1, 1
    %37 = vst [vmem:[%s36] sm:%s35] %v34

// kernel: conv_block1_forward.1
$region0: #{conv_block1_forward.1}
  #allocation0 [shape = 'u32[]', space=smem, size = 0x4, offset = 0x4, fixed_abs, tag = 'smem constant byte address 0x4 - core index']
  #allocation1 [shape = 'u32[144,128]{1,0:T(1,128)}', space=vmem, size = 0x12000, scoped, tag = 'internal scratch']
  %s0 = inlined_call_operand.vmem [shape: f32[16,256], index: 0, kind: input, shape index: {}]
  %s1 = inlined_call_operand.vmem [shape: f32[3,256,256], index: 1, kind: input, shape index: {}]
  %s2 = inlined_call_operand.vmem [shape: f32[1,256], index: 2, kind: input, shape index: {}]
  %s3 = inlined_call_operand.vmem [shape: f32[3,256,256], index: 3, kind: input, shape index: {}]
  %s4 = inlined_call_operand.vmem [shape: f32[1,256], index: 4, kind: input, shape index: {}]
  %s5 = inlined_call_operand.vmem [shape: f32[16,256], index: 5, kind: output, shape index: {}]
  %s6 = sld [smem:[#allocation0]]
  $region30: #{conv_block1_forward.1} parent=0
    _
  %s8 = ssub.s32 1, %s6
  %s9 = scalar_select 0, %s8, %s6
  // Predicated region
  $region2: #{conv_block1_forward.1} parent=0 // pred_check
    _
  $region3: #{conv_block1_forward.1} parent=0 // pred_check_branch
    %11 = sbr.rel (0) target = $region5
  $region4: #{conv_block1_forward.1} parent=0 // pred_region
    _
  $region5: #{conv_block1_forward.1} parent=0 // pred_fallthru
    _
  // Predicated region
  $region6: #{conv_block1_forward.1} parent=0 // pred_check
    _
  $region7: #{conv_block1_forward.1} parent=0 // pred_check_branch
    %13 = sbr.rel (0) target = $region9
  $region8: #{conv_block1_forward.1} parent=0 // pred_region
    _
  $region9: #{conv_block1_forward.1} parent=0 // pred_fallthru
    _
  // Predicated region
  $region10: #{conv_block1_forward.1} parent=0 // pred_check
    _
  $region11: #{conv_block1_forward.1} parent=0 // pred_check_branch
    %15 = sbr.rel (0) target = $region13
  $region12: #{conv_block1_forward.1} parent=0 // pred_region
    _
  $region13: #{conv_block1_forward.1} parent=0 // pred_fallthru
    _
  // Predicated region
  $region14: #{conv_block1_forward.1} parent=0 // pred_check
    _
  $region15: #{conv_block1_forward.1} parent=0 // pred_check_branch
    %17 = sbr.rel (0) target = $region17
  $region16: #{conv_block1_forward.1} parent=0 // pred_region
    _
  $region17: #{conv_block1_forward.1} parent=0 // pred_fallthru
    _
  // Predicated region
  $region18: #{conv_block1_forward.1} parent=0 // pred_check
    _
  $region19: #{conv_block1_forward.1} parent=0 // pred_check_branch
    %19 = sbr.rel (0) target = $region21
  $region20: #{conv_block1_forward.1} parent=0 // pred_region
    _
  $region21: #{conv_block1_forward.1} parent=0 // pred_fallthru
    _
  %v20 = vld [vmem:[%s0] sm:$0xff]
  %v21 = vld [vmem:[%s0 + $0x8] sm:$0xff]
  %v22 = vld [vmem:[%s0 + $0x10] sm:$0xff]
  %v23 = vld [vmem:[%s0 + $0x18] sm:$0xff]
  %v24 = vlaneseq
  %v25 = vshrl.u32 %v24, 7
  %v26 = vrot.slane %v20, 7
  %v27 = vrot.slane %v21, 7
  %v28 = vrot.slane %v22, 7
  %v29 = vrot.slane %v23, 7
  %vm30 = vcmp.lt.s32.totalorder %v25, 1
  %v31 = vsel %vm30, %v26, %v28
  %v32 = vsel %vm30, %v27, %v29
  %v33 = vsel %vm30, %v28, %v26
  %v34 = vsel %vm30, %v29, %v27
  %v35 = vrot.slane %v20, 1
  %v36 = vrot.slane %v21, 1
  %v37 = vrot.slane %v22, 1
  %v38 = vrot.slane %v23, 1
  %vm39 = vcmp.lt.s32.totalorder %v25, 7
  %v40 = vsel %vm39, %v35, %v37
  %v41 = vsel %vm39, %v36, %v38
  %v42 = vsel %vm39, %v37, %v35
  %v43 = vsel %vm39, %v38, %v36
  %vm44 = vcmp.eq.s32.totalorder %v25, 0
  %v45 = vsel %vm44, %v40, %v33
  %v46 = vsel %vm44, %v41, %v34
  %v47 = vsel %vm44, %v42, %v31
  %v48 = vsel %vm44, %v43, %v32
  %vm49 = vcmp.eq.s32.totalorder %v25, 7
  %v50 = vsel %vm49, %v33, %v40
  %v51 = vsel %vm49, %v34, %v41
  %v52 = vsel %vm49, %v31, %v42
  %v53 = vsel %vm49, %v32, %v43
  %v54 = vld [vmem:[%s1] sm:$0xff]
  %v55 = vld [vmem:[%s1 + $0x8] sm:$0xff]
  %v56 = vld [vmem:[%s1 + $0x10] sm:$0xff]
  %v57 = vld [vmem:[%s1 + $0x18] sm:$0xff]
  %v58 = vld [vmem:[%s1 + $0x20] sm:$0xff]
  %v59 = vld [vmem:[%s1 + $0x28] sm:$0xff]
  %v60 = vld [vmem:[%s1 + $0x30] sm:$0xff]
  %v61 = vld [vmem:[%s1 + $0x38] sm:$0xff]
  %v62 = vld [vmem:[%s1 + $0x40] sm:$0xff]
  %v63 = vld [vmem:[%s1 + $0x48] sm:$0xff]
  %v64 = vld [vmem:[%s1 + $0x50] sm:$0xff]
  %v65 = vld [vmem:[%s1 + $0x58] sm:$0xff]
  %v66 = vld [vmem:[%s1 + $0x60] sm:$0xff]
  %v67 = vld [vmem:[%s1 + $0x68] sm:$0xff]
  %v68 = vld [vmem:[%s1 + $0x70] sm:$0xff]
  %v69 = vld [vmem:[%s1 + $0x78] sm:$0xff]
  %v70 = vld [vmem:[%s1 + $0x80] sm:$0xff]
  %v71 = vld [vmem:[%s1 + $0x88] sm:$0xff]
  %v72 = vld [vmem:[%s1 + $0x90] sm:$0xff]
  %v73 = vld [vmem:[%s1 + $0x98] sm:$0xff]
  %v74 = vld [vmem:[%s1 + $0xa0] sm:$0xff]
  %v75 = vld [vmem:[%s1 + $0xa8] sm:$0xff]
  %v76 = vld [vmem:[%s1 + $0xb0] sm:$0xff]
  %v77 = vld [vmem:[%s1 + $0xb8] sm:$0xff]
  %v78 = vld [vmem:[%s1 + $0xc0] sm:$0xff]
  %v79 = vld [vmem:[%s1 + $0xc8] sm:$0xff]
  %v80 = vld [vmem:[%s1 + $0xd0] sm:$0xff]
  %v81 = vld [vmem:[%s1 + $0xd8] sm:$0xff]
  %v82 = vld [vmem:[%s1 + $0xe0] sm:$0xff]
  %v83 = vld [vmem:[%s1 + $0xe8] sm:$0xff]
  %v84 = vld [vmem:[%s1 + $0xf0] sm:$0xff]
  %v85 = vld [vmem:[%s1 + $0xf8] sm:$0xff]
  %v86 = vld [vmem:[%s1 + $0x100] sm:$0xff]
  %v87 = vld [vmem:[%s1 + $0x108] sm:$0xff]
  %v88 = vld [vmem:[%s1 + $0x110] sm:$0xff]
  %v89 = vld [vmem:[%s1 + $0x118] sm:$0xff]
  %v90 = vld [vmem:[%s1 + $0x120] sm:$0xff]
  %v91 = vld [vmem:[%s1 + $0x128] sm:$0xff]
  %v92 = vld [vmem:[%s1 + $0x130] sm:$0xff]
  %v93 = vld [vmem:[%s1 + $0x138] sm:$0xff]
  %v94 = vld [vmem:[%s1 + $0x140] sm:$0xff]
  %v95 = vld [vmem:[%s1 + $0x148] sm:$0xff]
  %v96 = vld [vmem:[%s1 + $0x150] sm:$0xff]
  %v97 = vld [vmem:[%s1 + $0x158] sm:$0xff]
  %v98 = vld [vmem:[%s1 + $0x160] sm:$0xff]
  %v99 = vld [vmem:[%s1 + $0x168] sm:$0xff]
  %v100 = vld [vmem:[%s1 + $0x170] sm:$0xff]
  %v101 = vld [vmem:[%s1 + $0x178] sm:$0xff]
  %v102 = vld [vmem:[%s1 + $0x180] sm:$0xff]
  %v103 = vld [vmem:[%s1 + $0x188] sm:$0xff]
  %v104 = vld [vmem:[%s1 + $0x190] sm:$0xff]
  %v105 = vld [vmem:[%s1 + $0x198] sm:$0xff]
  %v106 = vld [vmem:[%s1 + $0x1a0] sm:$0xff]
  %v107 = vld [vmem:[%s1 + $0x1a8] sm:$0xff]
  %v108 = vld [vmem:[%s1 + $0x1b0] sm:$0xff]
  %v109 = vld [vmem:[%s1 + $0x1b8] sm:$0xff]
  %v110 = vld [vmem:[%s1 + $0x1c0] sm:$0xff]
  %v111 = vld [vmem:[%s1 + $0x1c8] sm:$0xff]
  %v112 = vld [vmem:[%s1 + $0x1d0] sm:$0xff]
  %v113 = vld [vmem:[%s1 + $0x1d8] sm:$0xff]
  %v114 = vld [vmem:[%s1 + $0x1e0] sm:$0xff]
  %v115 = vld [vmem:[%s1 + $0x1e8] sm:$0xff]
  %v116 = vld [vmem:[%s1 + $0x1f0] sm:$0xff]
  %v117 = vld [vmem:[%s1 + $0x1f8] sm:$0xff]
  %s118 = scalar_lea.vmem %s1, 512
  %v119 = vld [vmem:[%s118] sm:$0xff]
  %v120 = vld [vmem:[%s118 + $0x8] sm:$0xff]
  %v121 = vld [vmem:[%s118 + $0x10] sm:$0xff]
  %v122 = vld [vmem:[%s118 + $0x18] sm:$0xff]
  %v123 = vld [vmem:[%s118 + $0x20] sm:$0xff]
  %v124 = vld [vmem:[%s118 + $0x28] sm:$0xff]
  %v125 = vld [vmem:[%s118 + $0x30] sm:$0xff]
  %v126 = vld [vmem:[%s118 + $0x38] sm:$0xff]
  %v127 = vld [vmem:[%s118 + $0x40] sm:$0xff]
  %v128 = vld [vmem:[%s118 + $0x48] sm:$0xff]
  %v129 = vld [vmem:[%s118 + $0x50] sm:$0xff]
  %v130 = vld [vmem:[%s118 + $0x58] sm:$0xff]
  %v131 = vld [vmem:[%s118 + $0x60] sm:$0xff]
  %v132 = vld [vmem:[%s118 + $0x68] sm:$0xff]
  %v133 = vld [vmem:[%s118 + $0x70] sm:$0xff]
  %v134 = vld [vmem:[%s118 + $0x78] sm:$0xff]
  %v135 = vld [vmem:[%s118 + $0x80] sm:$0xff]
  %v136 = vld [vmem:[%s118 + $0x88] sm:$0xff]
  %v137 = vld [vmem:[%s118 + $0x90] sm:$0xff]
  %v138 = vld [vmem:[%s118 + $0x98] sm:$0xff]
  %v139 = vld [vmem:[%s118 + $0xa0] sm:$0xff]
  %v140 = vld [vmem:[%s118 + $0xa8] sm:$0xff]
  %v141 = vld [vmem:[%s118 + $0xb0] sm:$0xff]
  %v142 = vld [vmem:[%s118 + $0xb8] sm:$0xff]
  %v143 = vld [vmem:[%s118 + $0xc0] sm:$0xff]
  %v144 = vld [vmem:[%s118 + $0xc8] sm:$0xff]
  %v145 = vld [vmem:[%s118 + $0xd0] sm:$0xff]
  %v146 = vld [vmem:[%s118 + $0xd8] sm:$0xff]
  %v147 = vld [vmem:[%s118 + $0xe0] sm:$0xff]
  %v148 = vld [vmem:[%s118 + $0xe8] sm:$0xff]
  %v149 = vld [vmem:[%s118 + $0xf0] sm:$0xff]
  %v150 = vld [vmem:[%s118 + $0xf8] sm:$0xff]
  %v151 = vld [vmem:[%s118 + $0x100] sm:$0xff]
  %v152 = vld [vmem:[%s118 + $0x108] sm:$0xff]
  %v153 = vld [vmem:[%s118 + $0x110] sm:$0xff]
  %v154 = vld [vmem:[%s118 + $0x118] sm:$0xff]
  %v155 = vld [vmem:[%s118 + $0x120] sm:$0xff]
  %v156 = vld [vmem:[%s118 + $0x128] sm:$0xff]
  %v157 = vld [vmem:[%s118 + $0x130] sm:$0xff]
  %v158 = vld [vmem:[%s118 + $0x138] sm:$0xff]
  %v159 = vld [vmem:[%s118 + $0x140] sm:$0xff]
  %v160 = vld [vmem:[%s118 + $0x148] sm:$0xff]
  %v161 = vld [vmem:[%s118 + $0x150] sm:$0xff]
  %v162 = vld [vmem:[%s118 + $0x158] sm:$0xff]
  %v163 = vld [vmem:[%s118 + $0x160] sm:$0xff]
  %v164 = vld [vmem:[%s118 + $0x168] sm:$0xff]
  %v165 = vld [vmem:[%s118 + $0x170] sm:$0xff]
  %v166 = vld [vmem:[%s118 + $0x178] sm:$0xff]
  %v167 = vld [vmem:[%s118 + $0x180] sm:$0xff]
  %v168 = vld [vmem:[%s118 + $0x188] sm:$0xff]
  %v169 = vld [vmem:[%s118 + $0x190] sm:$0xff]
  %v170 = vld [vmem:[%s118 + $0x198] sm:$0xff]
  %v171 = vld [vmem:[%s118 + $0x1a0] sm:$0xff]
  %v172 = vld [vmem:[%s118 + $0x1a8] sm:$0xff]
  %v173 = vld [vmem:[%s118 + $0x1b0] sm:$0xff]
  %v174 = vld [vmem:[%s118 + $0x1b8] sm:$0xff]
  %v175 = vld [vmem:[%s118 + $0x1c0] sm:$0xff]
  %v176 = vld [vmem:[%s118 + $0x1c8] sm:$0xff]
  %v177 = vld [vmem:[%s118 + $0x1d0] sm:$0xff]
  %v178 = vld [vmem:[%s118 + $0x1d8] sm:$0xff]
  %v179 = vld [vmem:[%s118 + $0x1e0] sm:$0xff]
  %v180 = vld [vmem:[%s118 + $0x1e8] sm:$0xff]
  %v181 = vld [vmem:[%s118 + $0x1f0] sm:$0xff]
  %v182 = vld [vmem:[%s118 + $0x1f8] sm:$0xff]
  %183 = vmatprep.subr.mxu0 %v120
  %184 = vmatpush1.msra.mxu0 %v119
  %185 = vmatprep.subr.mxu0 %v122
  %186 = vmatpush1.msra.mxu0 %v121
  %187 = vmatprep.subr.mxu0 %v124
  %188 = vmatpush1.msra.mxu0 %v123
  %189 = vmatprep.subr.mxu0 %v126
  %190 = vmatpush1.msra.mxu0 %v125
  %191 = vmatprep.subr.mxu0 %v128
  %192 = vmatpush1.msra.mxu0 %v127
  %193 = vmatprep.subr.mxu0 %v130
  %194 = vmatpush1.msra.mxu0 %v129
  %195 = vmatprep.subr.mxu0 %v132
  %196 = vmatpush1.msra.mxu0 %v131
  %197 = vmatprep.subr.mxu0 %v134
  %198 = vmatpush1.msra.mxu0 %v133
  %199 = vmatprep.subr.mxu0 %v136
  %200 = vmatpush1.msra.mxu0 %v135
  %201 = vmatprep.subr.mxu0 %v138
  %202 = vmatpush1.msra.mxu0 %v137
  %203 = vmatprep.subr.mxu0 %v140
  %204 = vmatpush1.msra.mxu0 %v139
  %205 = vmatprep.subr.mxu0 %v142
  %206 = vmatpush1.msra.mxu0 %v141
  %207 = vmatprep.subr.mxu0 %v144
  %208 = vmatpush1.msra.mxu0 %v143
  %209 = vmatprep.subr.mxu0 %v146
  %210 = vmatpush1.msra.mxu0 %v145
  %211 = vmatprep.subr.mxu0 %v148
  %212 = vmatpush1.msra.mxu0 %v147
  %213 = vmatprep.subr.mxu0 %v150
  %214 = vmatpush1.msra.mxu0 %v149
  %215 = vmatprep.subr.mxu0 %v152
  %216 = vmatpush1.msra.mxu0 %v151
  %217 = vmatprep.subr.mxu0 %v154
  %218 = vmatpush1.msra.mxu0 %v153
  %219 = vmatprep.subr.mxu0 %v156
  %220 = vmatpush1.msra.mxu0 %v155
  %221 = vmatprep.subr.mxu0 %v158
  %222 = vmatpush1.msra.mxu0 %v157
  %223 = vmatprep.subr.mxu0 %v160
  %224 = vmatpush1.msra.mxu0 %v159
  %225 = vmatprep.subr.mxu0 %v162
  %226 = vmatpush1.msra.mxu0 %v161
  %227 = vmatprep.subr.mxu0 %v164
  %228 = vmatpush1.msra.mxu0 %v163
  %229 = vmatprep.subr.mxu0 %v166
  %230 = vmatpush1.msra.mxu0 %v165
  %231 = vmatprep.subr.mxu0 %v168
  %232 = vmatpush1.msra.mxu0 %v167
  %233 = vmatprep.subr.mxu0 %v170
  %234 = vmatpush1.msra.mxu0 %v169
  %235 = vmatprep.subr.mxu0 %v172
  %236 = vmatpush1.msra.mxu0 %v171
  %237 = vmatprep.subr.mxu0 %v174
  %238 = vmatpush1.msra.mxu0 %v173
  %239 = vmatprep.subr.mxu0 %v176
  %240 = vmatpush1.msra.mxu0 %v175
  %241 = vmatprep.subr.mxu0 %v178
  %242 = vmatpush1.msra.mxu0 %v177
  %243 = vmatprep.subr.mxu0 %v180
  %244 = vmatpush1.msra.mxu0 %v179
  %245 = vmatprep.subr.mxu0 %v182
  %246 = vmatpush1.msra.mxu0 %v181
  %247 = vmatprep.mubr.f32.mxu0 %v21
  %248 = vmatmul.mubr.f32.gmra.mrb[0].mxu0 %v20
  %v249 = vpop.f32.mrb[0].mxu0
  %v250 = vadd.f32 0.0, %v249
  %v251 = vpop.f32.mrb[0].mxu0
  %v252 = vadd.f32 0.0, %v251
  %253 = vmatprep.mubr.f32.mxu0 %v23
  %254 = vmatmul.mubr.f32.gmra.mrb[0].mxu0 %v22
  %v255 = vpop.f32.mrb[0].mxu0
  %v256 = vadd.f32 0.0, %v255
  %v257 = vpop.f32.mrb[0].mxu0
  %v258 = vadd.f32 0.0, %v257
  %259 = vdwg.mxu0
  %260 = vmatprep.subr.mxu0 %v55
  %261 = vmatpush1.msra.mxu0 %v54
  %262 = vmatprep.subr.mxu0 %v57
  %263 = vmatpush1.msra.mxu0 %v56
  %264 = vmatprep.subr.mxu0 %v59
  %265 = vmatpush1.msra.mxu0 %v58
  %266 = vmatprep.subr.mxu0 %v61
  %267 = vmatpush1.msra.mxu0 %v60
  %268 = vmatprep.subr.mxu0 %v63
  %269 = vmatpush1.msra.mxu0 %v62
  %270 = vmatprep.subr.mxu0 %v65
  %271 = vmatpush1.msra.mxu0 %v64
  %272 = vmatprep.subr.mxu0 %v67
  %273 = vmatpush1.msra.mxu0 %v66
  %274 = vmatprep.subr.mxu0 %v69
  %275 = vmatpush1.msra.mxu0 %v68
  %276 = vmatprep.subr.mxu0 %v71
  %277 = vmatpush1.msra.mxu0 %v70
  %278 = vmatprep.subr.mxu0 %v73
  %279 = vmatpush1.msra.mxu0 %v72
  %280 = vmatprep.subr.mxu0 %v75
  %281 = vmatpush1.msra.mxu0 %v74
  %282 = vmatprep.subr.mxu0 %v77
  %283 = vmatpush1.msra.mxu0 %v76
  %284 = vmatprep.subr.mxu0 %v79
  %285 = vmatpush1.msra.mxu0 %v78
  %286 = vmatprep.subr.mxu0 %v81
  %287 = vmatpush1.msra.mxu0 %v80
  %288 = vmatprep.subr.mxu0 %v83
  %289 = vmatpush1.msra.mxu0 %v82
  %290 = vmatprep.subr.mxu0 %v85
  %291 = vmatpush1.msra.mxu0 %v84
  %292 = vmatprep.subr.mxu0 %v87
  %293 = vmatpush1.msra.mxu0 %v86
  %294 = vmatprep.subr.mxu0 %v89
  %295 = vmatpush1.msra.mxu0 %v88
  %296 = vmatprep.subr.mxu0 %v91
  %297 = vmatpush1.msra.mxu0 %v90
  %298 = vmatprep.subr.mxu0 %v93
  %299 = vmatpush1.msra.mxu0 %v92
  %300 = vmatprep.subr.mxu0 %v95
  %301 = vmatpush1.msra.mxu0 %v94
  %302 = vmatprep.subr.mxu0 %v97
  %303 = vmatpush1.msra.mxu0 %v96
  %304 = vmatprep.subr.mxu0 %v99
  %305 = vmatpush1.msra.mxu0 %v98
  %306 = vmatprep.subr.mxu0 %v101
  %307 = vmatpush1.msra.mxu0 %v100
  %308 = vmatprep.subr.mxu0 %v103
  %309 = vmatpush1.msra.mxu0 %v102
  %310 = vmatprep.subr.mxu0 %v105
  %311 = vmatpush1.msra.mxu0 %v104
  %312 = vmatprep.subr.mxu0 %v107
  %313 = vmatpush1.msra.mxu0 %v106
  %314 = vmatprep.subr.mxu0 %v109
  %315 = vmatpush1.msra.mxu0 %v108
  %316 = vmatprep.subr.mxu0 %v111
  %317 = vmatpush1.msra.mxu0 %v110
  %318 = vmatprep.subr.mxu0 %v113
  %319 = vmatpush1.msra.mxu0 %v112
  %320 = vmatprep.subr.mxu0 %v115
  %321 = vmatpush1.msra.mxu0 %v114
  %322 = vmatprep.subr.mxu0 %v117
  %323 = vmatpush1.msra.mxu0 %v116
  %324 = vmatprep.mubr.f32.mxu0 %v46
  %325 = vmatmul.mubr.f32.gmra.mrb[0].mxu0 %v45
  %v326 = vpop.f32.mrb[0].mxu0
  %v327 = vadd.f32 %v250, %v326
  %v328 = vpop.f32.mrb[0].mxu0
  %v329 = vadd.f32 %v252, %v328
  %330 = vmatprep.mubr.f32.mxu0 %v48
  %331 = vmatmul.mubr.f32.gmra.mrb[0].mxu0 %v47
  %v332 = vpop.f32.mrb[0].mxu0
  %v333 = vadd.f32 %v256, %v332
  %v334 = vpop.f32.mrb[0].mxu0
  %v335 = vadd.f32 %v258, %v334
  %336 = vdwg.mxu0
  %s337 = scalar_lea.vmem %s1, 1024
  %v338 = vld [vmem:[%s337] sm:$0xff]
  %v339 = vld [vmem:[%s337 + $0x8] sm:$0xff]
  %v340 = vld [vmem:[%s337 + $0x10] sm:$0xff]
  %v341 = vld [vmem:[%s337 + $0x18] sm:$0xff]
  %v342 = vld [vmem:[%s337 + $0x20] sm:$0xff]
  %v343 = vld [vmem:[%s337 + $0x28] sm:$0xff]
  %v344 = vld [vmem:[%s337 + $0x30] sm:$0xff]
  %v345 = vld [vmem:[%s337 + $0x38] sm:$0xff]
  %v346 = vld [vmem:[%s337 + $0x40] sm:$0xff]
  %v347 = vld [vmem:[%s337 + $0x48] sm:$0xff]
  %v348 = vld [vmem:[%s337 + $0x50] sm:$0xff]
  %v349 = vld [vmem:[%s337 + $0x58] sm:$0xff]
  %v350 = vld [vmem:[%s337 + $0x60] sm:$0xff]
  %v351 = vld [vmem:[%s337 + $0x68] sm:$0xff]
  %v352 = vld [vmem:[%s337 + $0x70] sm:$0xff]
  %v353 = vld [vmem:[%s337 + $0x78] sm:$0xff]
  %v354 = vld [vmem:[%s337 + $0x80] sm:$0xff]
  %v355 = vld [vmem:[%s337 + $0x88] sm:$0xff]
  %v356 = vld [vmem:[%s337 + $0x90] sm:$0xff]
  %v357 = vld [vmem:[%s337 + $0x98] sm:$0xff]
  %v358 = vld [vmem:[%s337 + $0xa0] sm:$0xff]
  %v359 = vld [vmem:[%s337 + $0xa8] sm:$0xff]
  %v360 = vld [vmem:[%s337 + $0xb0] sm:$0xff]
  %v361 = vld [vmem:[%s337 + $0xb8] sm:$0xff]
  %v362 = vld [vmem:[%s337 + $0xc0] sm:$0xff]
  %v363 = vld [vmem:[%s337 + $0xc8] sm:$0xff]
  %v364 = vld [vmem:[%s337 + $0xd0] sm:$0xff]
  %v365 = vld [vmem:[%s337 + $0xd8] sm:$0xff]
  %v366 = vld [vmem:[%s337 + $0xe0] sm:$0xff]
  %v367 = vld [vmem:[%s337 + $0xe8] sm:$0xff]
  %v368 = vld [vmem:[%s337 + $0xf0] sm:$0xff]
  %v369 = vld [vmem:[%s337 + $0xf8] sm:$0xff]
  %v370 = vld [vmem:[%s337 + $0x100] sm:$0xff]
  %v371 = vld [vmem:[%s337 + $0x108] sm:$0xff]
  %v372 = vld [vmem:[%s337 + $0x110] sm:$0xff]
  %v373 = vld [vmem:[%s337 + $0x118] sm:$0xff]
  %v374 = vld [vmem:[%s337 + $0x120] sm:$0xff]
  %v375 = vld [vmem:[%s337 + $0x128] sm:$0xff]
  %v376 = vld [vmem:[%s337 + $0x130] sm:$0xff]
  %v377 = vld [vmem:[%s337 + $0x138] sm:$0xff]
  %v378 = vld [vmem:[%s337 + $0x140] sm:$0xff]
  %v379 = vld [vmem:[%s337 + $0x148] sm:$0xff]
  %v380 = vld [vmem:[%s337 + $0x150] sm:$0xff]
  %v381 = vld [vmem:[%s337 + $0x158] sm:$0xff]
  %v382 = vld [vmem:[%s337 + $0x160] sm:$0xff]
  %v383 = vld [vmem:[%s337 + $0x168] sm:$0xff]
  %v384 = vld [vmem:[%s337 + $0x170] sm:$0xff]
  %v385 = vld [vmem:[%s337 + $0x178] sm:$0xff]
  %v386 = vld [vmem:[%s337 + $0x180] sm:$0xff]
  %v387 = vld [vmem:[%s337 + $0x188] sm:$0xff]
  %v388 = vld [vmem:[%s337 + $0x190] sm:$0xff]
  %v389 = vld [vmem:[%s337 + $0x198] sm:$0xff]
  %v390 = vld [vmem:[%s337 + $0x1a0] sm:$0xff]
  %v391 = vld [vmem:[%s337 + $0x1a8] sm:$0xff]
  %v392 = vld [vmem:[%s337 + $0x1b0] sm:$0xff]
  %v393 = vld [vmem:[%s337 + $0x1b8] sm:$0xff]
  %v394 = vld [vmem:[%s337 + $0x1c0] sm:$0xff]
  %v395 = vld [vmem:[%s337 + $0x1c8] sm:$0xff]
  %v396 = vld [vmem:[%s337 + $0x1d0] sm:$0xff]
  %v397 = vld [vmem:[%s337 + $0x1d8] sm:$0xff]
  %v398 = vld [vmem:[%s337 + $0x1e0] sm:$0xff]
  %v399 = vld [vmem:[%s337 + $0x1e8] sm:$0xff]
  %v400 = vld [vmem:[%s337 + $0x1f0] sm:$0xff]
  %v401 = vld [vmem:[%s337 + $0x1f8] sm:$0xff]
  %402 = vmatprep.subr.mxu0 %v339
  %403 = vmatpush1.msra.mxu0 %v338
  %404 = vmatprep.subr.mxu0 %v341
  %405 = vmatpush1.msra.mxu0 %v340
  %406 = vmatprep.subr.mxu0 %v343
  %407 = vmatpush1.msra.mxu0 %v342
  %408 = vmatprep.subr.mxu0 %v345
  %409 = vmatpush1.msra.mxu0 %v344
  %410 = vmatprep.subr.mxu0 %v347
  %411 = vmatpush1.msra.mxu0 %v346
  %412 = vmatprep.subr.mxu0 %v349
  %413 = vmatpush1.msra.mxu0 %v348
  %414 = vmatprep.subr.mxu0 %v351
  %415 = vmatpush1.msra.mxu0 %v350
  %416 = vmatprep.subr.mxu0 %v353
  %417 = vmatpush1.msra.mxu0 %v352
  %418 = vmatprep.subr.mxu0 %v355
  %419 = vmatpush1.msra.mxu0 %v354
  %420 = vmatprep.subr.mxu0 %v357
  %421 = vmatpush1.msra.mxu0 %v356
  %422 = vmatprep.subr.mxu0 %v359
  %423 = vmatpush1.msra.mxu0 %v358
  %424 = vmatprep.subr.mxu0 %v361
  %425 = vmatpush1.msra.mxu0 %v360
  %426 = vmatprep.subr.mxu0 %v363
  %427 = vmatpush1.msra.mxu0 %v362
  %428 = vmatprep.subr.mxu0 %v365
  %429 = vmatpush1.msra.mxu0 %v364
  %430 = vmatprep.subr.mxu0 %v367
  %431 = vmatpush1.msra.mxu0 %v366
  %432 = vmatprep.subr.mxu0 %v369
  %433 = vmatpush1.msra.mxu0 %v368
  %434 = vmatprep.subr.mxu0 %v371
  %435 = vmatpush1.msra.mxu0 %v370
  %436 = vmatprep.subr.mxu0 %v373
  %437 = vmatpush1.msra.mxu0 %v372
  %438 = vmatprep.subr.mxu0 %v375
  %439 = vmatpush1.msra.mxu0 %v374
  %440 = vmatprep.subr.mxu0 %v377
  %441 = vmatpush1.msra.mxu0 %v376
  %442 = vmatprep.subr.mxu0 %v379
  %443 = vmatpush1.msra.mxu0 %v378
  %444 = vmatprep.subr.mxu0 %v381
  %445 = vmatpush1.msra.mxu0 %v380
  %446 = vmatprep.subr.mxu0 %v383
  %447 = vmatpush1.msra.mxu0 %v382
  %448 = vmatprep.subr.mxu0 %v385
  %449 = vmatpush1.msra.mxu0 %v384
  %450 = vmatprep.subr.mxu0 %v387
  %451 = vmatpush1.msra.mxu0 %v386
  %452 = vmatprep.subr.mxu0 %v389
  %453 = vmatpush1.msra.mxu0 %v388
  %454 = vmatprep.subr.mxu0 %v391
  %455 = vmatpush1.msra.mxu0 %v390
  %456 = vmatprep.subr.mxu0 %v393
  %457 = vmatpush1.msra.mxu0 %v392
  %458 = vmatprep.subr.mxu0 %v395
  %459 = vmatpush1.msra.mxu0 %v394
  %460 = vmatprep.subr.mxu0 %v397
  %461 = vmatpush1.msra.mxu0 %v396
  %462 = vmatprep.subr.mxu0 %v399
  %463 = vmatpush1.msra.mxu0 %v398
  %464 = vmatprep.subr.mxu0 %v401
  %465 = vmatpush1.msra.mxu0 %v400
  %466 = vmatprep.mubr.f32.mxu0 %v51
  %467 = vmatmul.mubr.f32.gmra.mrb[0].mxu0 %v50
  %v468 = vpop.f32.mrb[0].mxu0
  %v469 = vadd.f32 0.0, %v468
  %v470 = vpop.f32.mrb[0].mxu0
  %v471 = vadd.f32 0.0, %v470
  %472 = vmatprep.mubr.f32.mxu0 %v53
  %473 = vmatmul.mubr.f32.gmra.mrb[0].mxu0 %v52
  %v474 = vpop.f32.mrb[0].mxu0
  %v475 = vadd.f32 0.0, %v474
  %v476 = vpop.f32.mrb[0].mxu0
  %v477 = vadd.f32 0.0, %v476
  %478 = vdwg.mxu0
  %v479 = vadd.f32 %v327, %v469
  %v480 = vadd.f32 %v329, %v471
  %v481 = vadd.f32 %v333, %v475
  %v482 = vadd.f32 %v335, %v477
  %v483 = vld [vmem:[%s2] sm:$0x3]
  %v485 = vlaneseq
  %v486 = vshrl.u32 %v485, 7
  %v487 = vsub.s32 0, %v486
  %v488 = vrot.slane %v483, %v487
  %v489 = vlaneseq
  %v490 = vshrl.u32 %v489, 7
  %v491 = vsub.s32 1, %v490
  %v492 = vrot.slane %v483, %v491
  %v495 = vadd.f32 %v479, %v488
  %v496 = vadd.f32 %v480, %v492
  %v497 = vadd.f32 %v481, %v488
  %v498 = vadd.f32 %v482, %v492
  %v499 = vrot.slane %v495, 7
  %v500 = vrot.slane %v496, 7
  %v501 = vrot.slane %v497, 7
  %v502 = vrot.slane %v498, 7
  %v503 = vsel %vm30, %v499, %v501
  %v504 = vsel %vm30, %v500, %v502
  %v505 = vsel %vm30, %v501, %v499
  %v506 = vsel %vm30, %v502, %v500
  %v507 = vrot.slane %v495, 1
  %v508 = vrot.slane %v496, 1
  %v509 = vrot.slane %v497, 1
  %v510 = vrot.slane %v498, 1
  %v511 = vsel %vm39, %v507, %v509
  %v512 = vsel %vm39, %v508, %v510
  %v513 = vsel %vm39, %v509, %v507
  %v514 = vsel %vm39, %v510, %v508
  %v515 = vsel %vm44, %v511, %v505
  %v516 = vsel %vm44, %v512, %v506
  %v517 = vsel %vm44, %v513, %v503
  %v518 = vsel %vm44, %v514, %v504
  %v519 = vsel %vm49, %v505, %v511
  %v520 = vsel %vm49, %v506, %v512
  %v521 = vsel %vm49, %v503, %v513
  %v522 = vsel %vm49, %v504, %v514
  %v523 = vld [vmem:[%s3] sm:$0xff]
  %v524 = vld [vmem:[%s3 + $0x8] sm:$0xff]
  %v525 = vld [vmem:[%s3 + $0x10] sm:$0xff]
  %v526 = vld [vmem:[%s3 + $0x18] sm:$0xff]
  %v527 = vld [vmem:[%s3 + $0x20] sm:$0xff]
  %v528 = vld [vmem:[%s3 + $0x28] sm:$0xff]
  %v529 = vld [vmem:[%s3 + $0x30] sm:$0xff]
  %v530 = vld [vmem:[%s3 + $0x38] sm:$0xff]
  %v531 = vld [vmem:[%s3 + $0x40] sm:$0xff]
  %v532 = vld [vmem:[%s3 + $0x48] sm:$0xff]
  %v533 = vld [vmem:[%s3 + $0x50] sm:$0xff]
  %v534 = vld [vmem:[%s3 + $0x58] sm:$0xff]
  %v535 = vld [vmem:[%s3 + $0x60] sm:$0xff]
  %v536 = vld [vmem:[%s3 + $0x68] sm:$0xff]
  %v537 = vld [vmem:[%s3 + $0x70] sm:$0xff]
  %v538 = vld [vmem:[%s3 + $0x78] sm:$0xff]
  %v539 = vld [vmem:[%s3 + $0x80] sm:$0xff]
  %v540 = vld [vmem:[%s3 + $0x88] sm:$0xff]
  %v541 = vld [vmem:[%s3 + $0x90] sm:$0xff]
  %v542 = vld [vmem:[%s3 + $0x98] sm:$0xff]
  %v543 = vld [vmem:[%s3 + $0xa0] sm:$0xff]
  %v544 = vld [vmem:[%s3 + $0xa8] sm:$0xff]
  %v545 = vld [vmem:[%s3 + $0xb0] sm:$0xff]
  %v546 = vld [vmem:[%s3 + $0xb8] sm:$0xff]
  %v547 = vld [vmem:[%s3 + $0xc0] sm:$0xff]
  %v548 = vld [vmem:[%s3 + $0xc8] sm:$0xff]
  %v549 = vld [vmem:[%s3 + $0xd0] sm:$0xff]
  %v550 = vld [vmem:[%s3 + $0xd8] sm:$0xff]
  %v551 = vld [vmem:[%s3 + $0xe0] sm:$0xff]
  %v552 = vld [vmem:[%s3 + $0xe8] sm:$0xff]
  %v553 = vld [vmem:[%s3 + $0xf0] sm:$0xff]
  %v554 = vld [vmem:[%s3 + $0xf8] sm:$0xff]
  %v555 = vld [vmem:[%s3 + $0x100] sm:$0xff]
  %v556 = vld [vmem:[%s3 + $0x108] sm:$0xff]
  %v557 = vld [vmem:[%s3 + $0x110] sm:$0xff]
  %v558 = vld [vmem:[%s3 + $0x118] sm:$0xff]
  %v559 = vld [vmem:[%s3 + $0x120] sm:$0xff]
  %v560 = vld [vmem:[%s3 + $0x128] sm:$0xff]
  %v561 = vld [vmem:[%s3 + $0x130] sm:$0xff]
  %v562 = vld [vmem:[%s3 + $0x138] sm:$0xff]
  %v563 = vld [vmem:[%s3 + $0x140] sm:$0xff]
  %v564 = vld [vmem:[%s3 + $0x148] sm:$0xff]
  %v565 = vld [vmem:[%s3 + $0x150] sm:$0xff]
  %v566 = vld [vmem:[%s3 + $0x158] sm:$0xff]
  %v567 = vld [vmem:[%s3 + $0x160] sm:$0xff]
  %v568 = vld [vmem:[%s3 + $0x168] sm:$0xff]
  %v569 = vld [vmem:[%s3 + $0x170] sm:$0xff]
  %v570 = vld [vmem:[%s3 + $0x178] sm:$0xff]
  %v571 = vld [vmem:[%s3 + $0x180] sm:$0xff]
  %v572 = vld [vmem:[%s3 + $0x188] sm:$0xff]
  %v573 = vld [vmem:[%s3 + $0x190] sm:$0xff]
  %v574 = vld [vmem:[%s3 + $0x198] sm:$0xff]
  %v575 = vld [vmem:[%s3 + $0x1a0] sm:$0xff]
  %v576 = vld [vmem:[%s3 + $0x1a8] sm:$0xff]
  %v577 = vld [vmem:[%s3 + $0x1b0] sm:$0xff]
  %v578 = vld [vmem:[%s3 + $0x1b8] sm:$0xff]
  %v579 = vld [vmem:[%s3 + $0x1c0] sm:$0xff]
  %v580 = vld [vmem:[%s3 + $0x1c8] sm:$0xff]
  %v581 = vld [vmem:[%s3 + $0x1d0] sm:$0xff]
  %v582 = vld [vmem:[%s3 + $0x1d8] sm:$0xff]
  %v583 = vld [vmem:[%s3 + $0x1e0] sm:$0xff]
  %v584 = vld [vmem:[%s3 + $0x1e8] sm:$0xff]
  %v585 = vld [vmem:[%s3 + $0x1f0] sm:$0xff]
  %v586 = vld [vmem:[%s3 + $0x1f8] sm:$0xff]
  %s587 = scalar_lea.vmem %s3, 512
  %v588 = vld [vmem:[%s587] sm:$0xff]
  %v589 = vld [vmem:[%s587 + $0x8] sm:$0xff]
  %v590 = vld [vmem:[%s587 + $0x10] sm:$0xff]
  %v591 = vld [vmem:[%s587 + $0x18] sm:$0xff]
  %v592 = vld [vmem:[%s587 + $0x20] sm:$0xff]
  %v593 = vld [vmem:[%s587 + $0x28] sm:$0xff]
  %v594 = vld [vmem:[%s587 + $0x30] sm:$0xff]
  %v595 = vld [vmem:[%s587 + $0x38] sm:$0xff]
  %v596 = vld [vmem:[%s587 + $0x40] sm:$0xff]
  %v597 = vld [vmem:[%s587 + $0x48] sm:$0xff]
  %v598 = vld [vmem:[%s587 + $0x50] sm:$0xff]
  %v599 = vld [vmem:[%s587 + $0x58] sm:$0xff]
  %v600 = vld [vmem:[%s587 + $0x60] sm:$0xff]
  %v601 = vld [vmem:[%s587 + $0x68] sm:$0xff]
  %v602 = vld [vmem:[%s587 + $0x70] sm:$0xff]
  %v603 = vld [vmem:[%s587 + $0x78] sm:$0xff]
  %v604 = vld [vmem:[%s587 + $0x80] sm:$0xff]
  %v605 = vld [vmem:[%s587 + $0x88] sm:$0xff]
  %v606 = vld [vmem:[%s587 + $0x90] sm:$0xff]
  %v607 = vld [vmem:[%s587 + $0x98] sm:$0xff]
  %v608 = vld [vmem:[%s587 + $0xa0] sm:$0xff]
  %v609 = vld [vmem:[%s587 + $0xa8] sm:$0xff]
  %v610 = vld [vmem:[%s587 + $0xb0] sm:$0xff]
  %v611 = vld [vmem:[%s587 + $0xb8] sm:$0xff]
  %v612 = vld [vmem:[%s587 + $0xc0] sm:$0xff]
  %v613 = vld [vmem:[%s587 + $0xc8] sm:$0xff]
  %v614 = vld [vmem:[%s587 + $0xd0] sm:$0xff]
  %v615 = vld [vmem:[%s587 + $0xd8] sm:$0xff]
  %v616 = vld [vmem:[%s587 + $0xe0] sm:$0xff]
  %v617 = vld [vmem:[%s587 + $0xe8] sm:$0xff]
  %v618 = vld [vmem:[%s587 + $0xf0] sm:$0xff]
  %v619 = vld [vmem:[%s587 + $0xf8] sm:$0xff]
  %v620 = vld [vmem:[%s587 + $0x100] sm:$0xff]
  %v621 = vld [vmem:[%s587 + $0x108] sm:$0xff]
  %v622 = vld [vmem:[%s587 + $0x110] sm:$0xff]
  %v623 = vld [vmem:[%s587 + $0x118] sm:$0xff]
  %v624 = vld [vmem:[%s587 + $0x120] sm:$0xff]
  %v625 = vld [vmem:[%s587 + $0x128] sm:$0xff]
  %v626 = vld [vmem:[%s587 + $0x130] sm:$0xff]
  %v627 = vld [vmem:[%s587 + $0x138] sm:$0xff]
  %v628 = vld [vmem:[%s587 + $0x140] sm:$0xff]
  %v629 = vld [vmem:[%s587 + $0x148] sm:$0xff]
  %v630 = vld [vmem:[%s587 + $0x150] sm:$0xff]
  %v631 = vld [vmem:[%s587 + $0x158] sm:$0xff]
  %v632 = vld [vmem:[%s587 + $0x160] sm:$0xff]
  %v633 = vld [vmem:[%s587 + $0x168] sm:$0xff]
  %v634 = vld [vmem:[%s587 + $0x170] sm:$0xff]
  %v635 = vld [vmem:[%s587 + $0x178] sm:$0xff]
  %v636 = vld [vmem:[%s587 + $0x180] sm:$0xff]
  %v637 = vld [vmem:[%s587 + $0x188] sm:$0xff]
  %v638 = vld [vmem:[%s587 + $0x190] sm:$0xff]
  %v639 = vld [vmem:[%s587 + $0x198] sm:$0xff]
  %v640 = vld [vmem:[%s587 + $0x1a0] sm:$0xff]
  %v641 = vld [vmem:[%s587 + $0x1a8] sm:$0xff]
  %v642 = vld [vmem:[%s587 + $0x1b0] sm:$0xff]
  %v643 = vld [vmem:[%s587 + $0x1b8] sm:$0xff]
  %v644 = vld [vmem:[%s587 + $0x1c0] sm:$0xff]
  %v645 = vld [vmem:[%s587 + $0x1c8] sm:$0xff]
  %v646 = vld [vmem:[%s587 + $0x1d0] sm:$0xff]
  %v647 = vld [vmem:[%s587 + $0x1d8] sm:$0xff]
  %v648 = vld [vmem:[%s587 + $0x1e0] sm:$0xff]
  %v649 = vld [vmem:[%s587 + $0x1e8] sm:$0xff]
  %v650 = vld [vmem:[%s587 + $0x1f0] sm:$0xff]
  %v651 = vld [vmem:[%s587 + $0x1f8] sm:$0xff]
  %652 = vmatprep.subr.mxu0 %v589
  %653 = vmatpush1.msra.mxu0 %v588
  %654 = vmatprep.subr.mxu0 %v591
  %655 = vmatpush1.msra.mxu0 %v590
  %656 = vmatprep.subr.mxu0 %v593
  %657 = vmatpush1.msra.mxu0 %v592
  %658 = vmatprep.subr.mxu0 %v595
  %659 = vmatpush1.msra.mxu0 %v594
  %660 = vmatprep.subr.mxu0 %v597
  %661 = vmatpush1.msra.mxu0 %v596
  %662 = vmatprep.subr.mxu0 %v599
  %663 = vmatpush1.msra.mxu0 %v598
  %664 = vmatprep.subr.mxu0 %v601
  %665 = vmatpush1.msra.mxu0 %v600
  %666 = vmatprep.subr.mxu0 %v603
  %667 = vmatpush1.msra.mxu0 %v602
  %668 = vmatprep.subr.mxu0 %v605
  %669 = vmatpush1.msra.mxu0 %v604
  %670 = vmatprep.subr.mxu0 %v607
  %671 = vmatpush1.msra.mxu0 %v606
  %672 = vmatprep.subr.mxu0 %v609
  %673 = vmatpush1.msra.mxu0 %v608
  %674 = vmatprep.subr.mxu0 %v611
  %675 = vmatpush1.msra.mxu0 %v610
  %676 = vmatprep.subr.mxu0 %v613
  %677 = vmatpush1.msra.mxu0 %v612
  %678 = vmatprep.subr.mxu0 %v615
  %679 = vmatpush1.msra.mxu0 %v614
  %680 = vmatprep.subr.mxu0 %v617
  %681 = vmatpush1.msra.mxu0 %v616
  %682 = vmatprep.subr.mxu0 %v619
  %683 = vmatpush1.msra.mxu0 %v618
  %684 = vmatprep.subr.mxu0 %v621
  %685 = vmatpush1.msra.mxu0 %v620
  %686 = vmatprep.subr.mxu0 %v623
  %687 = vmatpush1.msra.mxu0 %v622
  %688 = vmatprep.subr.mxu0 %v625
  %689 = vmatpush1.msra.mxu0 %v624
  %690 = vmatprep.subr.mxu0 %v627
  %691 = vmatpush1.msra.mxu0 %v626
  %692 = vmatprep.subr.mxu0 %v629
  %693 = vmatpush1.msra.mxu0 %v628
  %694 = vmatprep.subr.mxu0 %v631
  %695 = vmatpush1.msra.mxu0 %v630
  %696 = vmatprep.subr.mxu0 %v633
  %697 = vmatpush1.msra.mxu0 %v632
  %698 = vmatprep.subr.mxu0 %v635
  %699 = vmatpush1.msra.mxu0 %v634
  %700 = vmatprep.subr.mxu0 %v637
  %701 = vmatpush1.msra.mxu0 %v636
  %702 = vmatprep.subr.mxu0 %v639
  %703 = vmatpush1.msra.mxu0 %v638
  %704 = vmatprep.subr.mxu0 %v641
  %705 = vmatpush1.msra.mxu0 %v640
  %706 = vmatprep.subr.mxu0 %v643
  %707 = vmatpush1.msra.mxu0 %v642
  %708 = vmatprep.subr.mxu0 %v645
  %709 = vmatpush1.msra.mxu0 %v644
  %710 = vmatprep.subr.mxu0 %v647
  %711 = vmatpush1.msra.mxu0 %v646
  %712 = vmatprep.subr.mxu0 %v649
  %713 = vmatpush1.msra.mxu0 %v648
  %714 = vmatprep.subr.mxu0 %v651
  %715 = vmatpush1.msra.mxu0 %v650
  %716 = vmatprep.mubr.f32.mxu0 %v496
  %717 = vmatmul.mubr.f32.gmra.mrb[0].mxu0 %v495
  %v718 = vpop.f32.mrb[0].mxu0
  %v719 = vadd.f32 0.0, %v718
  %v720 = vpop.f32.mrb[0].mxu0
  %v721 = vadd.f32 0.0, %v720
  %722 = vmatprep.mubr.f32.mxu0 %v498
  %723 = vmatmul.mubr.f32.gmra.mrb[0].mxu0 %v497
  %v724 = vpop.f32.mrb[0].mxu0
  %v725 = vadd.f32 0.0, %v724
  %v726 = vpop.f32.mrb[0].mxu0
  %v727 = vadd.f32 0.0, %v726
  %728 = vdwg.mxu0
  %729 = vmatprep.subr.mxu0 %v524
  %730 = vmatpush1.msra.mxu0 %v523
  %731 = vmatprep.subr.mxu0 %v526
  %732 = vmatpush1.msra.mxu0 %v525
  %733 = vmatprep.subr.mxu0 %v528
  %734 = vmatpush1.msra.mxu0 %v527
  %735 = vmatprep.subr.mxu0 %v530
  %736 = vmatpush1.msra.mxu0 %v529
  %737 = vmatprep.subr.mxu0 %v532
  %738 = vmatpush1.msra.mxu0 %v531
  %739 = vmatprep.subr.mxu0 %v534
  %740 = vmatpush1.msra.mxu0 %v533
  %741 = vmatprep.subr.mxu0 %v536
  %742 = vmatpush1.msra.mxu0 %v535
  %743 = vmatprep.subr.mxu0 %v538
  %744 = vmatpush1.msra.mxu0 %v537
  %745 = vmatprep.subr.mxu0 %v540
  %746 = vmatpush1.msra.mxu0 %v539
  %747 = vmatprep.subr.mxu0 %v542
  %748 = vmatpush1.msra.mxu0 %v541
  %749 = vmatprep.subr.mxu0 %v544
  %750 = vmatpush1.msra.mxu0 %v543
  %751 = vmatprep.subr.mxu0 %v546
  %752 = vmatpush1.msra.mxu0 %v545
  %753 = vmatprep.subr.mxu0 %v548
  %754 = vmatpush1.msra.mxu0 %v547
  %755 = vmatprep.subr.mxu0 %v550
  %756 = vmatpush1.msra.mxu0 %v549
  %757 = vmatprep.subr.mxu0 %v552
  %758 = vmatpush1.msra.mxu0 %v551
  %759 = vmatprep.subr.mxu0 %v554
  %760 = vmatpush1.msra.mxu0 %v553
  %761 = vmatprep.subr.mxu0 %v556
  %762 = vmatpush1.msra.mxu0 %v555
  %763 = vmatprep.subr.mxu0 %v558
  %764 = vmatpush1.msra.mxu0 %v557
  %765 = vmatprep.subr.mxu0 %v560
  %766 = vmatpush1.msra.mxu0 %v559
  %767 = vmatprep.subr.mxu0 %v562
  %768 = vmatpush1.msra.mxu0 %v561
  %769 = vmatprep.subr.mxu0 %v564
  %770 = vmatpush1.msra.mxu0 %v563
  %771 = vmatprep.subr.mxu0 %v566
  %772 = vmatpush1.msra.mxu0 %v565
  %773 = vmatprep.subr.mxu0 %v568
  %774 = vmatpush1.msra.mxu0 %v567
  %775 = vmatprep.subr.mxu0 %v570
  %776 = vmatpush1.msra.mxu0 %v569
  %777 = vmatprep.subr.mxu0 %v572
  %778 = vmatpush1.msra.mxu0 %v571
  %779 = vmatprep.subr.mxu0 %v574
  %780 = vmatpush1.msra.mxu0 %v573
  %781 = vmatprep.subr.mxu0 %v576
  %782 = vmatpush1.msra.mxu0 %v575
  %783 = vmatprep.subr.mxu0 %v578
  %784 = vmatpush1.msra.mxu0 %v577
  %785 = vmatprep.subr.mxu0 %v580
  %786 = vmatpush1.msra.mxu0 %v579
  %787 = vmatprep.subr.mxu0 %v582
  %788 = vmatpush1.msra.mxu0 %v581
  %789 = vmatprep.subr.mxu0 %v584
  %790 = vmatpush1.msra.mxu0 %v583
  %791 = vmatprep.subr.mxu0 %v586
  %792 = vmatpush1.msra.mxu0 %v585
  %793 = vmatprep.mubr.f32.mxu0 %v516
  %794 = vmatmul.mubr.f32.gmra.mrb[0].mxu0 %v515
  %v795 = vpop.f32.mrb[0].mxu0
  %v796 = vadd.f32 %v719, %v795
  %v797 = vpop.f32.mrb[0].mxu0
  %v798 = vadd.f32 %v721, %v797
  %799 = vmatprep.mubr.f32.mxu0 %v518
  %800 = vmatmul.mubr.f32.gmra.mrb[0].mxu0 %v517
  %v801 = vpop.f32.mrb[0].mxu0
  %v802 = vadd.f32 %v725, %v801
  %v803 = vpop.f32.mrb[0].mxu0
  %v804 = vadd.f32 %v727, %v803
  %805 = vdwg.mxu0
  %s806 = scalar_lea.vmem %s3, 1024
  %v807 = vld [vmem:[%s806] sm:$0xff]
  %v808 = vld [vmem:[%s806 + $0x8] sm:$0xff]
  %v809 = vld [vmem:[%s806 + $0x10] sm:$0xff]
  %v810 = vld [vmem:[%s806 + $0x18] sm:$0xff]
  %v811 = vld [vmem:[%s806 + $0x20] sm:$0xff]
  %v812 = vld [vmem:[%s806 + $0x28] sm:$0xff]
  %v813 = vld [vmem:[%s806 + $0x30] sm:$0xff]
  %v814 = vld [vmem:[%s806 + $0x38] sm:$0xff]
  %v815 = vld [vmem:[%s806 + $0x40] sm:$0xff]
  %v816 = vld [vmem:[%s806 + $0x48] sm:$0xff]
  %v817 = vld [vmem:[%s806 + $0x50] sm:$0xff]
  %v818 = vld [vmem:[%s806 + $0x58] sm:$0xff]
  %v819 = vld [vmem:[%s806 + $0x60] sm:$0xff]
  %v820 = vld [vmem:[%s806 + $0x68] sm:$0xff]
  %v821 = vld [vmem:[%s806 + $0x70] sm:$0xff]
  %v822 = vld [vmem:[%s806 + $0x78] sm:$0xff]
  %v823 = vld [vmem:[%s806 + $0x80] sm:$0xff]
  %v824 = vld [vmem:[%s806 + $0x88] sm:$0xff]
  %v825 = vld [vmem:[%s806 + $0x90] sm:$0xff]
  %v826 = vld [vmem:[%s806 + $0x98] sm:$0xff]
  %v827 = vld [vmem:[%s806 + $0xa0] sm:$0xff]
  %v828 = vld [vmem:[%s806 + $0xa8] sm:$0xff]
  %v829 = vld [vmem:[%s806 + $0xb0] sm:$0xff]
  %v830 = vld [vmem:[%s806 + $0xb8] sm:$0xff]
  %v831 = vld [vmem:[%s806 + $0xc0] sm:$0xff]
  %v832 = vld [vmem:[%s806 + $0xc8] sm:$0xff]
  %v833 = vld [vmem:[%s806 + $0xd0] sm:$0xff]
  %v834 = vld [vmem:[%s806 + $0xd8] sm:$0xff]
  %v835 = vld [vmem:[%s806 + $0xe0] sm:$0xff]
  %v836 = vld [vmem:[%s806 + $0xe8] sm:$0xff]
  %v837 = vld [vmem:[%s806 + $0xf0] sm:$0xff]
  %v838 = vld [vmem:[%s806 + $0xf8] sm:$0xff]
  %v839 = vld [vmem:[%s806 + $0x100] sm:$0xff]
  %v840 = vld [vmem:[%s806 + $0x108] sm:$0xff]
  %v841 = vld [vmem:[%s806 + $0x110] sm:$0xff]
  %v842 = vld [vmem:[%s806 + $0x118] sm:$0xff]
  %v843 = vld [vmem:[%s806 + $0x120] sm:$0xff]
  %v844 = vld [vmem:[%s806 + $0x128] sm:$0xff]
  %v845 = vld [vmem:[%s806 + $0x130] sm:$0xff]
  %v846 = vld [vmem:[%s806 + $0x138] sm:$0xff]
  %v847 = vld [vmem:[%s806 + $0x140] sm:$0xff]
  %v848 = vld [vmem:[%s806 + $0x148] sm:$0xff]
  %v849 = vld [vmem:[%s806 + $0x150] sm:$0xff]
  %v850 = vld [vmem:[%s806 + $0x158] sm:$0xff]
  %v851 = vld [vmem:[%s806 + $0x160] sm:$0xff]
  %v852 = vld [vmem:[%s806 + $0x168] sm:$0xff]
  %v853 = vld [vmem:[%s806 + $0x170] sm:$0xff]
  %v854 = vld [vmem:[%s806 + $0x178] sm:$0xff]
  %v855 = vld [vmem:[%s806 + $0x180] sm:$0xff]
  %v856 = vld [vmem:[%s806 + $0x188] sm:$0xff]
  %v857 = vld [vmem:[%s806 + $0x190] sm:$0xff]
  %v858 = vld [vmem:[%s806 + $0x198] sm:$0xff]
  %v859 = vld [vmem:[%s806 + $0x1a0] sm:$0xff]
  %v860 = vld [vmem:[%s806 + $0x1a8] sm:$0xff]
  %v861 = vld [vmem:[%s806 + $0x1b0] sm:$0xff]
  %v862 = vld [vmem:[%s806 + $0x1b8] sm:$0xff]
  %v863 = vld [vmem:[%s806 + $0x1c0] sm:$0xff]
  %v864 = vld [vmem:[%s806 + $0x1c8] sm:$0xff]
  %v865 = vld [vmem:[%s806 + $0x1d0] sm:$0xff]
  %v866 = vld [vmem:[%s806 + $0x1d8] sm:$0xff]
  %v867 = vld [vmem:[%s806 + $0x1e0] sm:$0xff]
  %v868 = vld [vmem:[%s806 + $0x1e8] sm:$0xff]
  %v869 = vld [vmem:[%s806 + $0x1f0] sm:$0xff]
  %v870 = vld [vmem:[%s806 + $0x1f8] sm:$0xff]
  %871 = vmatprep.subr.mxu0 %v808
  %872 = vmatpush1.msra.mxu0 %v807
  %873 = vmatprep.subr.mxu0 %v810
  %874 = vmatpush1.msra.mxu0 %v809
  %875 = vmatprep.subr.mxu0 %v812
  %876 = vmatpush1.msra.mxu0 %v811
  %877 = vmatprep.subr.mxu0 %v814
  %878 = vmatpush1.msra.mxu0 %v813
  %879 = vmatprep.subr.mxu0 %v816
  %880 = vmatpush1.msra.mxu0 %v815
  %881 = vmatprep.subr.mxu0 %v818
  %882 = vmatpush1.msra.mxu0 %v817
  %883 = vmatprep.subr.mxu0 %v820
  %884 = vmatpush1.msra.mxu0 %v819
  %885 = vmatprep.subr.mxu0 %v822
  %886 = vmatpush1.msra.mxu0 %v821
  %887 = vmatprep.subr.mxu0 %v824
  %888 = vmatpush1.msra.mxu0 %v823
  %889 = vmatprep.subr.mxu0 %v826
  %890 = vmatpush1.msra.mxu0 %v825
  %891 = vmatprep.subr.mxu0 %v828
  %892 = vmatpush1.msra.mxu0 %v827
  %893 = vmatprep.subr.mxu0 %v830
  %894 = vmatpush1.msra.mxu0 %v829
  %895 = vmatprep.subr.mxu0 %v832
  %896 = vmatpush1.msra.mxu0 %v831
  %897 = vmatprep.subr.mxu0 %v834
  %898 = vmatpush1.msra.mxu0 %v833
  %899 = vmatprep.subr.mxu0 %v836
  %900 = vmatpush1.msra.mxu0 %v835
  %901 = vmatprep.subr.mxu0 %v838
  %902 = vmatpush1.msra.mxu0 %v837
  %903 = vmatprep.subr.mxu0 %v840
  %904 = vmatpush1.msra.mxu0 %v839
  %905 = vmatprep.subr.mxu0 %v842
  %906 = vmatpush1.msra.mxu0 %v841
  %907 = vmatprep.subr.mxu0 %v844
  %908 = vmatpush1.msra.mxu0 %v843
  %909 = vmatprep.subr.mxu0 %v846
  %910 = vmatpush1.msra.mxu0 %v845
  %911 = vmatprep.subr.mxu0 %v848
  %912 = vmatpush1.msra.mxu0 %v847
  %913 = vmatprep.subr.mxu0 %v850
  %914 = vmatpush1.msra.mxu0 %v849
  %915 = vmatprep.subr.mxu0 %v852
  %916 = vmatpush1.msra.mxu0 %v851
  %917 = vmatprep.subr.mxu0 %v854
  %918 = vmatpush1.msra.mxu0 %v853
  %919 = vmatprep.subr.mxu0 %v856
  %920 = vmatpush1.msra.mxu0 %v855
  %921 = vmatprep.subr.mxu0 %v858
  %922 = vmatpush1.msra.mxu0 %v857
  %923 = vmatprep.subr.mxu0 %v860
  %924 = vmatpush1.msra.mxu0 %v859
  %925 = vmatprep.subr.mxu0 %v862
  %926 = vmatpush1.msra.mxu0 %v861
  %927 = vmatprep.subr.mxu0 %v864
  %928 = vmatpush1.msra.mxu0 %v863
  %929 = vmatprep.subr.mxu0 %v866
  %930 = vmatpush1.msra.mxu0 %v865
  %931 = vmatprep.subr.mxu0 %v868
  %932 = vmatpush1.msra.mxu0 %v867
  %933 = vmatprep.subr.mxu0 %v870
  %934 = vmatpush1.msra.mxu0 %v869
  %935 = vmatprep.mubr.f32.mxu0 %v520
  %936 = vmatmul.mubr.f32.gmra.mrb[0].mxu0 %v519
  %v937 = vpop.f32.mrb[0].mxu0
  %v938 = vadd.f32 0.0, %v937
  %v939 = vpop.f32.mrb[0].mxu0
  %v940 = vadd.f32 0.0, %v939
  %941 = vmatprep.mubr.f32.mxu0 %v522
  %942 = vmatmul.mubr.f32.gmra.mrb[0].mxu0 %v521
  %v943 = vpop.f32.mrb[0].mxu0
  %v944 = vadd.f32 0.0, %v943
  %v945 = vpop.f32.mrb[0].mxu0
  %v946 = vadd.f32 0.0, %v945
  %947 = vdwg.mxu0
  %v948 = vadd.f32 %v796, %v938
  %v949 = vadd.f32 %v798, %v940
  %v950 = vadd.f32 %v802, %v944
  %v951 = vadd.f32 %v804, %v946
  %v952 = vld [vmem:[%s4] sm:$0x3]
  %v954 = vlaneseq
  %v955 = vshrl.u32 %v954, 7
  %v956 = vsub.s32 0, %v955
  %v957 = vrot.slane %v952, %v956
  %v958 = vlaneseq
  %v959 = vshrl.u32 %v958, 7
  %v960 = vsub.s32 1, %v959
  %v961 = vrot.slane %v952, %v960
  %v964 = vadd.f32 %v948, %v957
  %v965 = vadd.f32 %v949, %v961
  %v966 = vadd.f32 %v950, %v957
  %v967 = vadd.f32 %v951, %v961
  %vm968 = vcmp.ge.f32.partialorder %v964, 0.0
  %vm969 = vcmp.ge.f32.partialorder %v965, 0.0
  %vm970 = vcmp.ge.f32.partialorder %v966, 0.0
  %vm971 = vcmp.ge.f32.partialorder %v967, 0.0
  %v972 = vmul.f32 %v964, 0.01
  %v973 = vmul.f32 %v965, 0.01
  %v974 = vmul.f32 %v966, 0.01
  %v975 = vmul.f32 %v967, 0.01
  %v976 = vsel %vm968, %v964, %v972
  %v977 = vsel %vm969, %v965, %v973
  %v978 = vsel %vm970, %v966, %v974
  %v979 = vsel %vm971, %v967, %v975
  %980 = vst [vmem:[%s5] sm:$0xff] %v976
  %981 = vst [vmem:[%s5 + $0x8] sm:$0xff] %v977
  %982 = vst [vmem:[%s5 + $0x10] sm:$0xff] %v978
  %983 = vst [vmem:[%s5 + $0x18] sm:$0xff] %v979
  // Predicated region
  $region22: #{conv_block1_forward.1} parent=0 // pred_check
    _
  $region23: #{conv_block1_forward.1} parent=0 // pred_check_branch
    %985 = sbr.rel (0) target = $region25
  $region24: #{conv_block1_forward.1} parent=0 // pred_region
    _
  $region25: #{conv_block1_forward.1} parent=0 // pred_fallthru
    _
  // Predicated region
  $region26: #{conv_block1_forward.1} parent=0 // pred_check
    _
  $region27: #{conv_block1_forward.1} parent=0 // pred_check_branch
    %987 = sbr.rel (0) target = $region29
  $region28: #{conv_block1_forward.1} parent=0 // pred_region
    _
  $region29: #{conv_block1_forward.1} parent=0 // pred_fallthru
    _

</llo_original>
